<compile_context>
chip_gen: v7x
topology: tpu7x:2x2x1
jax: 0.10.0
libtpu: 0.0.40
codegen_flags: <defaults>
</compile_context>

<pallas_src>
import functools
import math

import jax
import jax.numpy as jnp
from jax.experimental import pallas as pl
from jax.experimental.pallas import tpu as pltpu


def make_positional_encoding(d_model: int, max_len: int = 5000) -> jnp.ndarray:
    """Deterministic buffer setup, identical to the torch __init__."""
    position = jnp.arange(max_len, dtype=jnp.float32)[:, None]              # [max_len, 1]
    div_term = jnp.exp(
        jnp.arange(0, d_model, 2, dtype=jnp.float32)
        * (-math.log(10000.0) / d_model)
    )                                                                        # [d_model//2]
    angles = position * div_term                                             # [max_len, d_model//2]
    pe = jnp.zeros((max_len, 1, d_model), dtype=jnp.float32)
    pe = pe.at[:, 0, 0::2].set(jnp.sin(angles))
    pe = pe.at[:, 0, 1::2].set(jnp.cos(angles))
    return pe


def _pe_add_kernel(x_ref, pe_ref, o_ref, *, batch: int):
    # x_ref : (tile_s, batch*d_model)  lane-dense fused view of x
    # pe_ref: (tile_s, d_model)        per-position encoding (no batch copy in HBM)
    pe = pe_ref[...]
    if batch > 1:
        # Broadcast over batch along the fused lane axis: [pe | pe | ... | pe].
        # Cheap (only touches the small pe tile); the main traffic is x/o DMA.
        pe = jnp.concatenate([pe] * batch, axis=-1)
    o_ref[...] = x_ref[...] + pe


def _choose_tile_s(seq_len: int, row_bytes: int) -> int:
    """Seq-tile size: multiple of 8 rows, ~2 MiB x-blocks, prefer >=2 grid steps."""
    if seq_len <= 8:
        return seq_len  # single block spanning the full (tiny) seq axis
    target_bytes = 2 * 1024 * 1024  # ~2 MiB/block: amortizes ~0.35 us/step overhead,
    #                                  3 double-buffered operands stay far below the
    #                                  16/32 MiB scoped-VMEM defaults (v5e / v6e+v7x).
    t = max(8, (target_bytes // max(row_bytes, 1)) // 8 * 8)
    # Prefer at least 2 grid steps: DMA/compute overlap + both v7x TensorCores busy.
    half = ((pl.cdiv(seq_len, 2) + 7) // 8) * 8
    return min(t, half, seq_len)


def positional_encoding_forward(
    x: jnp.ndarray, pe: jnp.ndarray, *, use_pallas: bool | None = None
) -> jnp.ndarray:
    """
    Args:
        x:  [seq_len, batch, d_model]
        pe: [max_len, 1, d_model]  (max_len >= seq_len)
    Returns:
        [seq_len, batch, d_model]
    """
    seq_len, batch, d_model = x.shape
    if seq_len > pe.shape[0]:
        raise IndexError("sequence length exceeds max_len of positional encoding")

    # Slice + cast once in the wrapper (halves pe HBM traffic for bf16 activations
    # and avoids an in-kernel f32->bf16 convert).
    pe_sliced = pe[:seq_len, 0, :].astype(x.dtype)          # [seq_len, d_model]

    itemsize = x.dtype.itemsize
    total_bytes = seq_len * batch * d_model * itemsize
    if use_pallas is None:
        # Below ~1 MiB the fixed pallas_call overhead dominates; let XLA fuse the add.
        use_pallas = total_bytes >= (1 << 20)
    if not use_pallas:
        return x + pe_sliced[:, None, :]

    fused = batch * d_model
    x2 = x.reshape(seq_len, fused)        # free collapse of trailing contiguous dims

    row_bytes = fused * itemsize
    # NOTE: for extremely wide rows (row_bytes >> 2 MiB) one would additionally
    # tile the fused lane axis; not needed for typical transformer shapes.
    tile_s = _choose_tile_s(seq_len, row_bytes)
    grid = (pl.cdiv(seq_len, tile_s),)    # cdiv: never silently drop a tail tile

    out2 = pl.pallas_call(
        functools.partial(_pe_add_kernel, batch=batch),
        out_shape=jax.ShapeDtypeStruct((seq_len, fused), x.dtype),
        grid_spec=pltpu.PrefetchScalarGridSpec(
            num_scalar_prefetch=0,
            grid=grid,
            in_specs=[
                pl.BlockSpec((tile_s, fused), lambda i: (i, 0)),     # x block
                pl.BlockSpec((tile_s, d_model), lambda i: (i, 0)),   # pe block
            ],
            out_specs=pl.BlockSpec((tile_s, fused), lambda i: (i, 0)),
        ),
        input_output_aliases={0: 0},   # y overwrites x's buffer when donatable
        compiler_params=pltpu.CompilerParams(
            dimension_semantics=("parallel",),
        ),
    )(x2, pe_sliced)

    return out2.reshape(seq_len, batch, d_model)


if __name__ == "__main__":
    # Small shapes consistent with the module's forward: x is [seq, batch, d_model].
    # d_model=128 keeps the demo lane-dense (128-lane multiple) while staying tiny.
    seq_len, batch, d_model = 8, 2, 128
    max_len = 64

    key = jax.random.PRNGKey(0)
    x = jax.random.normal(key, (seq_len, batch, d_model), dtype=jnp.float32)

    pe = make_positional_encoding(d_model, max_len=max_len)

    # Reference computed first (pure JAX, same math).
    y_ref = x + pe[:seq_len]

    # Force the Pallas path so the kernel is actually exercised at this tiny size
    # (production callers use the default auto-dispatch, which falls back to a
    # fused XLA add below ~1 MiB).
    y = positional_encoding_forward(x, pe, use_pallas=True)
    y = jax.block_until_ready(y)

    assert y.shape == (seq_len, batch, d_model)
    assert jnp.allclose(y, y_ref, atol=1e-6), "mismatch vs reference"

    print("KERNEL_OK")
</pallas_src>

<mosaic_0001>
module attributes {stable_mosaic.version = 11 : i64} {
  func.func @_pe_add_kernel(%arg0: i32, %arg1: memref<8x256xf32, #tpu.memory_space<vmem>>, %arg2: memref<8x128xf32, #tpu.memory_space<vmem>>, %arg3: memref<8x256xf32, #tpu.memory_space<vmem>>) attributes {dimension_semantics = [#tpu.dimension_semantics<parallel>], iteration_bounds = array<i64: 1>, scalar_prefetch = 0 : i64, scratch_operands = 0 : i64, tpu.core_type = #tpu.core_type<tc>, window_params = [{transform_indices = @transform_0, window_bounds = array<i64: 8, 256>}, {transform_indices = @transform_1, window_bounds = array<i64: 8, 128>}, {transform_indices = @transform_2, window_bounds = array<i64: 8, 256>}]} {
    %c0 = arith.constant 0 : index
    %c0_0 = arith.constant 0 : index
    %0 = vector.load %arg2[%c0, %c0_0] : memref<8x128xf32, #tpu.memory_space<vmem>>, vector<8x128xf32>
    %1 = tpu.concatenate %0, %0 in 1 : vector<8x128xf32>, vector<8x128xf32> -> vector<8x256xf32>
    %c0_1 = arith.constant 0 : index
    %c0_2 = arith.constant 0 : index
    %2 = vector.load %arg1[%c0_1, %c0_2] : memref<8x256xf32, #tpu.memory_space<vmem>>, vector<8x256xf32>
    %3 = arith.addf %2, %1 : vector<8x256xf32>
    %c0_3 = arith.constant 0 : index
    %c0_4 = arith.constant 0 : index
    %4 = vector.load %arg3[%c0_3, %c0_4] : memref<8x256xf32, #tpu.memory_space<vmem>>, vector<8x256xf32>
    tpu.vector_store %arg3[%c0_3, %c0_4], %3 {strides = array<i32>} : memref<8x256xf32, #tpu.memory_space<vmem>>, vector<8x256xf32>,
    return
  }
  func.func @transform_0(%arg0: i32) -> (i32, i32) {
    %c0_i32 = arith.constant 0 : i32
    %c0_i32_0 = arith.constant 0 : i32
    return %arg0, %c0_i32 : i32, i32
  }
  func.func @transform_1(%arg0: i32) -> (i32, i32) {
    %c0_i32 = arith.constant 0 : i32
    %c0_i32_0 = arith.constant 0 : i32
    return %arg0, %c0_i32 : i32, i32
  }
  func.func @transform_2(%arg0: i32) -> (i32, i32) {
    %c0_i32 = arith.constant 0 : i32
    %c0_i32_0 = arith.constant 0 : i32
    return %arg0, %c0_i32 : i32, i32
  }
}

</mosaic_0001>

<llo_original>
// kernel: tpu_custom_call.1
$region0: #{tpu_custom_call.1}
  #allocation0 [shape = 'u32[]', space=smem, size = 0x4, offset = 0x4, fixed_abs, tag = 'smem constant byte address 0x4 - core index']
  #allocation1 [shape = 'u32[144,128]{1,0:T(1,128)}', space=vmem, size = 0x12000, scoped, tag = 'internal scratch']
  %s0 = inlined_call_operand.hbm [shape: f32[8,256], index: 0, kind: input, shape index: {}, may-alias: {0,2}]
  %s1 = inlined_call_operand.vmem [shape: f32[8,128], index: 1, kind: input, shape index: {}]
  %s2 = inlined_call_operand.hbm [shape: f32[8,256], index: 2, kind: output, shape index: {}, may-alias: {0,2}]
  %s3 = sld [smem:[#allocation0]]
  $region22: #{tpu_custom_call.1} parent=0
    _
  %s5 = ssub.s32 1, %s3
  %s6 = scalar_select 0, %s5, %s3
  $region1: #{tpu_custom_call.1} parent=0
    #allocation2 [shape = 'u8[8192]{0}', space=vmem, size = 0x2000, scoped, tag = 'input window, operand 0, single buffered']
    #allocation3 [shape = 's32[1]{0}', space=sflag, size = 0x4, scoped, tag = 'scoped memory for tpu_custom_call.1']
    #allocation4 [shape = 's32[1]{0}', space=sflag, size = 0x4, scoped, tag = 'scoped memory for tpu_custom_call.1']
    #allocation5 [shape = 'u8[8192]{0}', space=vmem, size = 0x2000, scoped, tag = 'output window, operand 0, single buffered']
    %7 = vsyncpa [#allocation3], 0
    %8 = vsyncpa [#allocation4], 0
    // Predicated region
    $region2: #{tpu_custom_call.1} parent=1 // pred_check
      _
    $region3: #{tpu_custom_call.1} parent=1 // pred_check_branch
      %10 = sbr.rel (0) target = $region5
    $region4: #{tpu_custom_call.1} parent=1 // pred_region
      %s12 = ssub.s32 256, 256
      %13 = vsyncadd [#allocation3], %s12
      %s15 = sshll.u32 [#allocation2], 4
      %s16 = int_to_ptr.vmem [resolvable:$true] %s15
      %18 = dma.hbm_to_vmem [thread:$0]  %s0, 256, %s16, [#allocation3]
    $region5: #{tpu_custom_call.1} parent=1 // pred_fallthru
      _
    // Predicated region
    $region6: #{tpu_custom_call.1} parent=1 // pred_check
      _
    $region7: #{tpu_custom_call.1} parent=1 // pred_check_branch
      %20 = sbr.rel (0) target = $region9
    $region8: #{tpu_custom_call.1} parent=1 // pred_region
      _
    $region9: #{tpu_custom_call.1} parent=1 // pred_fallthru
      _
    // Predicated region
    $region10: #{tpu_custom_call.1} parent=1 // pred_check
      _
    $region11: #{tpu_custom_call.1} parent=1 // pred_check_branch
      %22 = sbr.rel (0) target = $region13
    $region12: #{tpu_custom_call.1} parent=1 // pred_region
      %23 = dma.done [#allocation3], 256
    $region13: #{tpu_custom_call.1} parent=1 // pred_fallthru
      _
    %v24 = vld [vmem:[%s1] sm:$0xff]
    %v25 = vld [vmem:[#allocation2] sm:$0xff]
    %v26 = vld [vmem:[#allocation2 + $0x8] sm:$0xff]
    %v27 = vadd.f32 %v25, %v24
    %v28 = vadd.f32 %v26, %v24
    %29 = vst [vmem:[#allocation5] sm:$0xff] %v27
    %30 = vst [vmem:[#allocation5 + $0x8] sm:$0xff] %v28
    // Predicated region
    $region14: #{tpu_custom_call.1} parent=1 // pred_check
      _
    $region15: #{tpu_custom_call.1} parent=1 // pred_check_branch
      %32 = sbr.rel (0) target = $region17
    $region16: #{tpu_custom_call.1} parent=1 // pred_region
      %s34 = ssub.s32 256, 256
      %35 = vsyncadd [#allocation4], %s34
      %s37 = sshll.u32 [#allocation5], 4
      %s38 = int_to_ptr.vmem [resolvable:$true] %s37
      %40 = dma.vmem_to_hbm [thread:$0]  %s38, 256, %s2, [#allocation4]
    $region17: #{tpu_custom_call.1} parent=1 // pred_fallthru
      _
    // Predicated region
    $region18: #{tpu_custom_call.1} parent=1 // pred_check
      _
    $region19: #{tpu_custom_call.1} parent=1 // pred_check_branch
      %42 = sbr.rel (0) target = $region21
    $region20: #{tpu_custom_call.1} parent=1 // pred_region
      %43 = dma.done [#allocation4], 256
    $region21: #{tpu_custom_call.1} parent=1 // pred_fallthru
      _
    %44 = vsyncpa [#allocation3], 1
    %45 = vsyncpa [#allocation4], 1

</llo_original>
